<compile_context>
chip_gen: v6e
topology: v6e:2x2x1
jax: 0.10.0
libtpu: 0.0.40
codegen_flags: <defaults>
</compile_context>

<pallas_src>
import functools

import jax
import jax.numpy as jnp
from jax.experimental import pallas as pl
from jax.experimental.pallas import tpu as pltpu


# ----------------------------- Pallas kernel --------------------------------
def rnnet_seq_kernel(tok_ref,        # SMEM (T,)        int32 token ids
                     embed_ref,      # VMEM (V, E)      embedding table
                     h0_ref,         # VMEM (1, H)      initial hidden
                     c0_ref,         # VMEM (1, H)      initial cell
                     w_cat_ref,      # VMEM (E+H, 4H)   [W_ih^T ; W_hh^T]
                     bias_ref,       # VMEM (1, 4H)     b_ih + b_hh
                     wfc_ref,        # VMEM (H, O)      W_fc^T
                     bfc_ref,        # VMEM (1, O)      b_fc
                     out_ref):       # VMEM (T, O+2H)   per-step [y | h | c]
    H = h0_ref.shape[-1]
    T = out_ref.shape[0]

    def step(t, carry):
        h, c = carry

        # Embedding lookup: dynamic row gather from the resident VMEM table.
        tok = tok_ref[t]
        x = embed_ref[pl.ds(tok, 1), :]                       # (1, E)

        # Fused gate matmul on the MXU: one dot over concat([x, h]).
        xh = jnp.concatenate([x, h], axis=-1)                 # (1, E+H)
        gates = (jnp.dot(xh, w_cat_ref[...],
                         preferred_element_type=jnp.float32)
                 + bias_ref[...])                             # (1, 4H)

        # Whole-vector activations (2 EUP passes), then per-gate slices.
        sig = jax.nn.sigmoid(gates)
        tnh = jnp.tanh(gates)
        i_g = sig[:, 0 * H:1 * H]
        f_g = sig[:, 1 * H:2 * H]
        g_g = tnh[:, 2 * H:3 * H]
        o_g = sig[:, 3 * H:4 * H]

        c_new = f_g * c + i_g * g_g
        h_new = o_g * jnp.tanh(c_new)

        # Output head: y = h_new @ W_fc^T + b_fc
        y = (jnp.dot(h_new, wfc_ref[...],
                     preferred_element_type=jnp.float32)
             + bfc_ref[...])                                  # (1, O)

        # Lane-dense packed per-step output row: [y | h | c]  (O + 2H lanes).
        out_ref[pl.ds(t, 1), :] = jnp.concatenate([y, h_new, c_new], axis=-1)
        return h_new, c_new

    h0 = h0_ref[...]
    c0 = c0_ref[...]
    jax.lax.fori_loop(0, T, step, (h0, c0))


# --------------------------- parameter packing --------------------------------
def pack_params(params):
    """One-time parameter prep (do NOT redo this per token)."""
    w_cat = jnp.concatenate([params["w_ih"].T, params["w_hh"].T], axis=0)  # (E+H, 4H)
    return {
        "embed":  params["embed"],                                         # (V, E)
        "w_cat":  w_cat,
        "bias":   (params["b_ih"] + params["b_hh"])[None, :],              # (1, 4H)
        "w_fc_t": params["w_fc"].T,                                        # (H, O)
        "b_fc":   params["b_fc"][None, :],                                 # (1, O)
    }


# ------------------------------ JAX wrappers ----------------------------------
@functools.partial(jax.jit, static_argnames=())
def rnnet_sequence_forward(tokens, hidden, cell, packed):
    """Run the RNNet over a whole token sequence in one pallas_call.

    tokens : (T,) int32
    hidden : (1, 1, H) initial hidden state
    cell   : (1, 1, H) initial cell state
    returns (ys, hidden_new, cell_new) with shapes (T, O), (1, 1, H), (1, 1, H)
    where ys[t] equals the module's y output at step t.
    """
    T = tokens.shape[0]
    H = hidden.shape[-1]
    O = packed["b_fc"].shape[-1]

    smem = pl.BlockSpec(memory_space=pltpu.MemorySpace.SMEM)
    vmem = pl.BlockSpec(memory_space=pltpu.MemorySpace.VMEM)

    packed_out = pl.pallas_call(
        rnnet_seq_kernel,
        out_shape=jax.ShapeDtypeStruct((T, O + 2 * H), jnp.float32),
        in_specs=[smem, vmem, vmem, vmem, vmem, vmem, vmem, vmem],
        out_specs=vmem,
    )(tokens.astype(jnp.int32),
      packed["embed"], hidden[0], cell[0],
      packed["w_cat"], packed["bias"], packed["w_fc_t"], packed["b_fc"])

    ys = packed_out[:, :O]                       # (T, O)
    h_final = packed_out[-1:, O:O + H]           # (1, H)
    c_final = packed_out[-1:, O + H:O + 2 * H]   # (1, H)
    return ys, h_final[None], c_final[None]


def rnnet_forward(token, hidden, cell, packed):
    """Module-exact single-token forward (T = 1 case of the sequence kernel)."""
    tokens = jnp.reshape(jnp.asarray(token, jnp.int32), (1,))
    ys, h_new, c_new = rnnet_sequence_forward(tokens, hidden, cell, packed)
    return ys, h_new, c_new                      # ys has shape (1, O)


# --------------------------- pure-JAX reference --------------------------------
def rnnet_reference(token, hidden, cell, params):
    x = params["embed"][token][None, :]
    h0, c0 = hidden[0], cell[0]
    gates = (x @ params["w_ih"].T + params["b_ih"]
             + h0 @ params["w_hh"].T + params["b_hh"])
    H = params["w_hh"].shape[-1]
    i = jax.nn.sigmoid(gates[:, 0 * H:1 * H])
    f = jax.nn.sigmoid(gates[:, 1 * H:2 * H])
    g = jnp.tanh(gates[:, 2 * H:3 * H])
    o = jax.nn.sigmoid(gates[:, 3 * H:4 * H])
    c_new = f * c0 + i * g
    h_new = o * jnp.tanh(c_new)
    y = h_new @ params["w_fc"].T + params["b_fc"]
    return y, h_new[None], c_new[None]


def init_params(key, input_size, embedding_size, hidden_size, output_size):
    """Deterministic synthetic parameters (PyTorch layer shapes)."""
    ks = jax.random.split(key, 7)
    s = 0.1
    return {
        "embed": s * jax.random.normal(ks[0], (input_size, embedding_size), jnp.float32),
        "w_ih":  s * jax.random.normal(ks[1], (4 * hidden_size, embedding_size), jnp.float32),
        "w_hh":  s * jax.random.normal(ks[2], (4 * hidden_size, hidden_size), jnp.float32),
        "b_ih":  s * jax.random.normal(ks[3], (4 * hidden_size,), jnp.float32),
        "b_hh":  s * jax.random.normal(ks[4], (4 * hidden_size,), jnp.float32),
        "w_fc":  s * jax.random.normal(ks[5], (output_size, hidden_size), jnp.float32),
        "b_fc":  s * jax.random.normal(ks[6], (output_size,), jnp.float32),
    }


if __name__ == "__main__":
    # Small char-RNN style shapes; O + 2H = 128 gives a lane-dense packed output.
    input_size = 64        # vocab size
    embedding_size = 32
    hidden_size = 32
    output_size = 64
    num_layers = 1
    batch_size = 1
    seq_len = 16

    key = jax.random.PRNGKey(0)
    pkey, tkey = jax.random.split(key)
    params = init_params(pkey, input_size, embedding_size, hidden_size, output_size)
    packed = pack_params(params)   # one-time packing, outside the hot loop

    tokens = jax.random.randint(tkey, (seq_len,), 0, input_size, dtype=jnp.int32)
    hidden = jnp.zeros((num_layers, batch_size, hidden_size), jnp.float32)  # init_hidden()
    cell = jnp.zeros((num_layers, batch_size, hidden_size), jnp.float32)

    # Whole-sequence kernel (T steps inside one pallas_call).
    ys, h_new, c_new = rnnet_sequence_forward(tokens, hidden, cell, packed)
    jax.block_until_ready((ys, h_new, c_new))

    # Reference: call the single-step pure-JAX model sequentially.
    y_hist = []
    h_r, c_r = hidden, cell
    for t in range(seq_len):
        y_t, h_r, c_r = rnnet_reference(tokens[t], h_r, c_r, params)
        y_hist.append(y_t)
    y_ref = jnp.concatenate(y_hist, axis=0)

    assert jnp.allclose(ys, y_ref, atol=1e-5), "per-step y mismatch"
    assert jnp.allclose(h_new, h_r, atol=1e-5), "final hidden mismatch"
    assert jnp.allclose(c_new, c_r, atol=1e-5), "final cell mismatch"

    # Also exercise the module-exact single-token forward.
    y1, h1, c1 = rnnet_forward(tokens[0], hidden, cell, packed)
    y1_ref, h1_ref, c1_ref = rnnet_reference(tokens[0], hidden, cell, params)
    jax.block_until_ready((y1, h1, c1))
    assert jnp.allclose(y1, y1_ref, atol=1e-5), "single-step y mismatch"
    assert jnp.allclose(h1, h1_ref, atol=1e-5), "single-step hidden mismatch"
    assert jnp.allclose(c1, c1_ref, atol=1e-5), "single-step cell mismatch"

    print("KERNEL_OK")
</pallas_src>

<mosaic_0001>
module attributes {stable_mosaic.version = 11 : i64} {
  func.func @rnnet_seq_kernel(%arg0: memref<16xi32, #tpu.memory_space<smem>>, %arg1: memref<64x32xf32, #tpu.memory_space<vmem>>, %arg2: memref<1x32xf32, #tpu.memory_space<vmem>>, %arg3: memref<1x32xf32, #tpu.memory_space<vmem>>, %arg4: memref<64x128xf32, #tpu.memory_space<vmem>>, %arg5: memref<1x128xf32, #tpu.memory_space<vmem>>, %arg6: memref<32x64xf32, #tpu.memory_space<vmem>>, %arg7: memref<1x64xf32, #tpu.memory_space<vmem>>, %arg8: memref<16x128xf32, #tpu.memory_space<vmem>>) attributes {dimension_semantics = [], scalar_prefetch = 0 : i64, scratch_operands = 0 : i64, tpu.core_type = #tpu.core_type<tc>} {
    %c0 = arith.constant 0 : index
    %c0_0 = arith.constant 0 : index
    %0 = vector.load %arg2[%c0, %c0_0] : memref<1x32xf32, #tpu.memory_space<vmem>>, vector<1x32xf32>
    %c0_1 = arith.constant 0 : index
    %c0_2 = arith.constant 0 : index
    %1 = vector.load %arg3[%c0_1, %c0_2] : memref<1x32xf32, #tpu.memory_space<vmem>>, vector<1x32xf32>
    %c0_i32 = arith.constant 0 : i32
    %c16_i32 = arith.constant 16 : i32
    %2 = arith.addi %c0_i32, %c16_i32 : i32
    %c1_i32 = arith.constant 1 : i32
    %3:2 = scf.for %arg9 = %c0_i32 to %2 step %c1_i32 iter_args(%arg10 = %0, %arg11 = %1) -> (vector<1x32xf32>, vector<1x32xf32>)  : i32 {
      %4 = arith.index_cast %arg9 : i32 to index
      %5 = memref.load %arg0[%4] : memref<16xi32, #tpu.memory_space<smem>>
      %6 = arith.index_cast %5 : i32 to index
      %c0_4 = arith.constant 0 : index
      %7 = vector.load %arg1[%6, %c0_4] : memref<64x32xf32, #tpu.memory_space<vmem>>, vector<1x32xf32>
      %8 = tpu.concatenate %7, %arg10 in 1 : vector<1x32xf32>, vector<1x32xf32> -> vector<1x64xf32>
      %c0_5 = arith.constant 0 : index
      %c0_6 = arith.constant 0 : index
      %9 = vector.load %arg4[%c0_5, %c0_6] : memref<64x128xf32, #tpu.memory_space<vmem>>, vector<64x128xf32>
      %cst = arith.constant dense<0.000000e+00> : vector<1x128xf32>
      %10 = tpu.matmul %8, %9, %cst {dimension_numbers = #tpu.dot_dimension_numbers<[1], [0], [0], [1], [0, 0, 1, 1], [], []>} : vector<1x64xf32>, vector<64x128xf32>, vector<1x128xf32> -> vector<1x128xf32>
      %c0_7 = arith.constant 0 : index
      %c0_8 = arith.constant 0 : index
      %11 = vector.load %arg5[%c0_7, %c0_8] : memref<1x128xf32, #tpu.memory_space<vmem>>, vector<1x128xf32>
      %12 = arith.addf %10, %11 : vector<1x128xf32>
      %13 = arith.negf %12 : vector<1x128xf32>
      %14 = math.exp %13 : vector<1x128xf32>
      %cst_9 = arith.constant 1.000000e+00 : f32
      %15 = vector.broadcast %cst_9 : f32 to vector<1x128xf32>
      %16 = arith.addf %15, %14 : vector<1x128xf32>
      %17 = arith.divf %15, %16 : vector<1x128xf32>
      %18 = math.tanh %12 : vector<1x128xf32>
      %19 = vector.extract_strided_slice %17 {offsets = [0, 0], sizes = [1, 32], strides = [1, 1]} : vector<1x128xf32> to vector<1x32xf32>
      %20 = vector.extract_strided_slice %17 {offsets = [0, 32], sizes = [1, 32], strides = [1, 1]} : vector<1x128xf32> to vector<1x32xf32>
      %21 = vector.extract_strided_slice %18 {offsets = [0, 64], sizes = [1, 32], strides = [1, 1]} : vector<1x128xf32> to vector<1x32xf32>
      %22 = vector.extract_strided_slice %17 {offsets = [0, 96], sizes = [1, 32], strides = [1, 1]} : vector<1x128xf32> to vector<1x32xf32>
      %23 = arith.mulf %20, %arg11 : vector<1x32xf32>
      %24 = arith.mulf %19, %21 : vector<1x32xf32>
      %25 = arith.addf %23, %24 : vector<1x32xf32>
      %26 = math.tanh %25 : vector<1x32xf32>
      %27 = arith.mulf %22, %26 : vector<1x32xf32>
      %c0_10 = arith.constant 0 : index
      %c0_11 = arith.constant 0 : index
      %28 = vector.load %arg6[%c0_10, %c0_11] : memref<32x64xf32, #tpu.memory_space<vmem>>, vector<32x64xf32>
      %cst_12 = arith.constant dense<0.000000e+00> : vector<1x64xf32>
      %29 = tpu.matmul %27, %28, %cst_12 {dimension_numbers = #tpu.dot_dimension_numbers<[1], [0], [0], [1], [0, 0, 1, 1], [], []>} : vector<1x32xf32>, vector<32x64xf32>, vector<1x64xf32> -> vector<1x64xf32>
      %c0_13 = arith.constant 0 : index
      %c0_14 = arith.constant 0 : index
      %30 = vector.load %arg7[%c0_13, %c0_14] : memref<1x64xf32, #tpu.memory_space<vmem>>, vector<1x64xf32>
      %31 = arith.addf %29, %30 : vector<1x64xf32>
      %32 = tpu.concatenate %31, %27, %25 in 1 : vector<1x64xf32>, vector<1x32xf32>, vector<1x32xf32> -> vector<1x128xf32>
      %33 = arith.index_cast %arg9 : i32 to index
      %c0_15 = arith.constant 0 : index
      %34 = vector.load %arg8[%33, %c0_15] : memref<16x128xf32, #tpu.memory_space<vmem>>, vector<1x128xf32>
      tpu.vector_store %arg8[%33, %c0_15], %32 {strides = array<i32>} : memref<16x128xf32, #tpu.memory_space<vmem>>, vector<1x128xf32>,
      scf.yield %27, %25 : vector<1x32xf32>, vector<1x32xf32>
    }
    %c16_i32_3 = arith.constant 16 : i32
    return
  }
}

</mosaic_0001>

<llo_original>
// kernel: rnnet_sequence_forward.1
$region0: #{rnnet_sequence_forward.1}
  #allocation0 [shape = 'u32[]', space=smem, size = 0x4, offset = 0x4, fixed_abs, tag = 'smem constant byte address 0x4 - core index']
  #allocation1 [shape = 'u32[144,128]{1,0:T(1,128)}', space=vmem, size = 0x12000, scoped, tag = 'internal scratch']
  %s0 = inlined_call_operand.vmem [shape: s32[16], index: 0, kind: input, shape index: {}]
  %s1 = inlined_call_operand.vmem [shape: f32[64,32], index: 1, kind: input, shape index: {}]
  %s2 = inlined_call_operand.vmem [shape: f32[1,32], index: 2, kind: input, shape index: {}]
  %s3 = inlined_call_operand.vmem [shape: f32[1,32], index: 3, kind: input, shape index: {}]
  %s4 = inlined_call_operand.vmem [shape: f32[64,128], index: 4, kind: input, shape index: {}]
  %s5 = inlined_call_operand.vmem [shape: f32[1,128], index: 5, kind: input, shape index: {}]
  %s6 = inlined_call_operand.vmem [shape: f32[32,64], index: 6, kind: input, shape index: {}]
  %s7 = inlined_call_operand.vmem [shape: f32[1,64], index: 7, kind: input, shape index: {}]
  %s8 = inlined_call_operand.vmem [shape: f32[16,128], index: 8, kind: output, shape index: {}]
  %s9 = sld [smem:[#allocation0]]
  $region53: #{rnnet_sequence_forward.1} parent=0
    _
  %s11 = ssub.s32 1, %s9
  %s12 = scalar_select 0, %s11, %s9
  $region1: #{rnnet_sequence_forward.1} parent=0
    #allocation2 [shape = 'u8[512]{0}', space=smem, size = 0x200, scoped, tag = 'input window, operand 0, single buffered']
    #allocation3 [shape = 's32[1]{0}', space=sflag, size = 0x4, scoped, tag = 'scoped memory for rnnet_sequence_forward.1']
    %13 = vsyncpa [#allocation3], 0
    // Predicated region
    $region2: #{rnnet_sequence_forward.1} parent=1 // pred_check
      _
    $region3: #{rnnet_sequence_forward.1} parent=1 // pred_check_branch
      %15 = sbr.rel (0) target = $region5
    $region4: #{rnnet_sequence_forward.1} parent=1 // pred_region
      %s17 = ssub.s32 16, 16
      %18 = vsyncadd [#allocation3], %s17
      %s20 = sshll.u32 %s0, 4
      %s21 = int_to_ptr.vmem [resolvable:$true] %s20
      %23 = dma.vmem_to_smem %s21, 16, [#allocation2], [#allocation3]
    $region5: #{rnnet_sequence_forward.1} parent=1 // pred_fallthru
      _
    // Predicated region
    $region6: #{rnnet_sequence_forward.1} parent=1 // pred_check
      _
    $region7: #{rnnet_sequence_forward.1} parent=1 // pred_check_branch
      %25 = sbr.rel (0) target = $region9
    $region8: #{rnnet_sequence_forward.1} parent=1 // pred_region
      _
    $region9: #{rnnet_sequence_forward.1} parent=1 // pred_fallthru
      _
    // Predicated region
    $region10: #{rnnet_sequence_forward.1} parent=1 // pred_check
      _
    $region11: #{rnnet_sequence_forward.1} parent=1 // pred_check_branch
      %27 = sbr.rel (0) target = $region13
    $region12: #{rnnet_sequence_forward.1} parent=1 // pred_region
      _
    $region13: #{rnnet_sequence_forward.1} parent=1 // pred_fallthru
      _
    // Predicated region
    $region14: #{rnnet_sequence_forward.1} parent=1 // pred_check
      _
    $region15: #{rnnet_sequence_forward.1} parent=1 // pred_check_branch
      %29 = sbr.rel (0) target = $region17
    $region16: #{rnnet_sequence_forward.1} parent=1 // pred_region
      _
    $region17: #{rnnet_sequence_forward.1} parent=1 // pred_fallthru
      _
    // Predicated region
    $region18: #{rnnet_sequence_forward.1} parent=1 // pred_check
      _
    $region19: #{rnnet_sequence_forward.1} parent=1 // pred_check_branch
      %31 = sbr.rel (0) target = $region21
    $region20: #{rnnet_sequence_forward.1} parent=1 // pred_region
      _
    $region21: #{rnnet_sequence_forward.1} parent=1 // pred_fallthru
      _
    // Predicated region
    $region22: #{rnnet_sequence_forward.1} parent=1 // pred_check
      _
    $region23: #{rnnet_sequence_forward.1} parent=1 // pred_check_branch
      %33 = sbr.rel (0) target = $region25
    $region24: #{rnnet_sequence_forward.1} parent=1 // pred_region
      _
    $region25: #{rnnet_sequence_forward.1} parent=1 // pred_fallthru
      _
    // Predicated region
    $region26: #{rnnet_sequence_forward.1} parent=1 // pred_check
      _
    $region27: #{rnnet_sequence_forward.1} parent=1 // pred_check_branch
      %35 = sbr.rel (0) target = $region29
    $region28: #{rnnet_sequence_forward.1} parent=1 // pred_region
      _
    $region29: #{rnnet_sequence_forward.1} parent=1 // pred_fallthru
      _
    // Predicated region
    $region30: #{rnnet_sequence_forward.1} parent=1 // pred_check
      _
    $region31: #{rnnet_sequence_forward.1} parent=1 // pred_check_branch
      %37 = sbr.rel (0) target = $region33
    $region32: #{rnnet_sequence_forward.1} parent=1 // pred_region
      _
    $region33: #{rnnet_sequence_forward.1} parent=1 // pred_fallthru
      _
    // Predicated region
    $region34: #{rnnet_sequence_forward.1} parent=1 // pred_check
      _
    $region35: #{rnnet_sequence_forward.1} parent=1 // pred_check_branch
      %39 = sbr.rel (0) target = $region37
    $region36: #{rnnet_sequence_forward.1} parent=1 // pred_region
      %40 = dma.done [#allocation3], 16
    $region37: #{rnnet_sequence_forward.1} parent=1 // pred_fallthru
      _
    %41 = sfence
    %v42 = vld [vmem:[%s2] sm:$0x1]
    %v43 = vld [vmem:[%s3] sm:$0x1]
    loop: start=0, step=1, limit=16
    $region38: #{rnnet_sequence_forward.1} parent=1 // loop_pre_header
      _
    $region39: #{rnnet_sequence_forward.1} parent=1 // loop_header
      %s45 = sphi 0, %s49
      %p46 = scmp.ge.s32.totalorder %s45, 16
      %v50 = vphi %v42, %v179
      %v51 = vphi %v43, %v266
    $region40: #{rnnet_sequence_forward.1} parent=1 // loop_header_branch
      %48 = sbr.rel (%p46) target = $region44
    $region41: #{rnnet_sequence_forward.1} parent=1 // loop_body
      %s52 = sld [smem:[#allocation2 + %s45]]
      %s53 = scalar_lea.vmem %s1, %s52
      %v54 = vld [vmem:[%s53] sm:$0x1]
      %56 = vrot.lane.b32.xlu0 %v50, 32
      %v57 = vpop.permute.xlu0 %56
      %vm59 = vcmask 261120
      %v60 = vsel %vm59, %v54, %v57
      %v61 = vld [vmem:[%s4] sm:$0xff]
      %v62 = vld [vmem:[%s4 + $0x8] sm:$0xff]
      %v63 = vld [vmem:[%s4 + $0x10] sm:$0xff]
      %v64 = vld [vmem:[%s4 + $0x18] sm:$0xff]
      %v65 = vld [vmem:[%s4 + $0x20] sm:$0xff]
      %v66 = vld [vmem:[%s4 + $0x28] sm:$0xff]
      %v67 = vld [vmem:[%s4 + $0x30] sm:$0xff]
      %v68 = vld [vmem:[%s4 + $0x38] sm:$0xff]
      %v69 = vld [vmem:[%s5] sm:$0x1]
      %vm70 = vcmask 523264
      %v72 = vsel %vm70, %v60, 0
      %74 = vmatprep.subr.mxu0 0.0
      %75 = vmatpush1.msra.mxu0 0.0
      %76 = vmatprep.subr.mxu0 0.0
      %77 = vmatpush1.msra.mxu0 0.0
      %78 = vmatprep.subr.mxu0 0.0
      %79 = vmatpush1.msra.mxu0 0.0
      %80 = vmatprep.subr.mxu0 0.0
      %81 = vmatpush1.msra.mxu0 0.0
      %82 = vmatprep.subr.mxu0 0.0
      %83 = vmatpush1.msra.mxu0 0.0
      %84 = vmatprep.subr.mxu0 0.0
      %85 = vmatpush1.msra.mxu0 0.0
      %86 = vmatprep.subr.mxu0 0.0
      %87 = vmatpush1.msra.mxu0 0.0
      %88 = vmatprep.subr.mxu0 0.0
      %89 = vmatpush1.msra.mxu0 0.0
      %90 = vmatprep.subr.mxu0 0.0
      %91 = vmatpush1.msra.mxu0 %v68
      %92 = vmatprep.subr.mxu0 0.0
      %93 = vmatpush1.msra.mxu0 %v67
      %94 = vmatprep.subr.mxu0 0.0
      %95 = vmatpush1.msra.mxu0 %v66
      %96 = vmatprep.subr.mxu0 0.0
      %97 = vmatpush1.msra.mxu0 %v65
      %98 = vmatprep.subr.mxu0 0.0
      %99 = vmatpush1.msra.mxu0 %v64
      %100 = vmatprep.subr.mxu0 0.0
      %101 = vmatpush1.msra.mxu0 %v63
      %102 = vmatprep.subr.mxu0 0.0
      %103 = vmatpush1.msra.mxu0 %v62
      %104 = vmatprep.subr.mxu0 0.0
      %105 = vmatpush1.msra.mxu0 %v61
      %106 = vmatprep.subr.mxu0 0.0
      %107 = vmatpush2.msra.mxu0 0.0
      %108 = vmatprep.subr.mxu0 0.0
      %109 = vmatpush2.msra.mxu0 0.0
      %110 = vmatprep.subr.mxu0 0.0
      %111 = vmatpush2.msra.mxu0 0.0
      %112 = vmatprep.subr.mxu0 0.0
      %113 = vmatpush2.msra.mxu0 0.0
      %114 = vmatprep.subr.mxu0 0.0
      %115 = vmatpush2.msra.mxu0 0.0
      %116 = vmatprep.subr.mxu0 0.0
      %117 = vmatpush2.msra.mxu0 0.0
      %118 = vmatprep.subr.mxu0 0.0
      %119 = vmatpush2.msra.mxu0 0.0
      %120 = vmatprep.subr.mxu0 0.0
      %121 = vmatpush2.msra.mxu0 0.0
      %122 = vmatprep.subr.mxu0 0.0
      %123 = vmatpush2.msra.mxu0 0.0
      %124 = vmatprep.subr.mxu0 0.0
      %125 = vmatpush2.msra.mxu0 0.0
      %126 = vmatprep.subr.mxu0 0.0
      %127 = vmatpush2.msra.mxu0 0.0
      %128 = vmatprep.subr.mxu0 0.0
      %129 = vmatpush2.msra.mxu0 0.0
      %130 = vmatprep.subr.mxu0 0.0
      %131 = vmatpush2.msra.mxu0 0.0
      %132 = vmatprep.subr.mxu0 0.0
      %133 = vmatpush2.msra.mxu0 0.0
      %134 = vmatprep.subr.mxu0 0.0
      %135 = vmatpush2.msra.mxu0 0.0
      %136 = vmatprep.subr.mxu0 0.0
      %137 = vmatpush2.msra.mxu0 0.0
      %138 = vmatprep.mubr.f32.mxu0 0.0
      %139 = vmatmul.mubr.f32.gmra.mxu0 %v72
      %v140 = vpop.f32.mrf.mxu0
      %v141 = vadd.f32 %v69, %v140
      %v142 = vpop.f32.mrf.mxu0
      %143 = vdwg.mxu0
      %v144 = vxor.u32 %v141, 2147483648
      %v145 = vmul.f32 %v144, 1.442695
      %v146 = vpow.pop %v145
      %v147 = vadd.f32 %v146, 1.0
      %v148 = vrcp.pop %v147
      %v149 = vmul.f32 1.0, %v148
      %v150 = vtanh.pop %v141
      %152 = vrot.lane.b32.xlu0 %v51, 32
      %v153 = vpop.permute.xlu0 %152
      %v155 = vmul.f32 %v149, %v153
      %157 = vrot.lane.b32.xlu0 %v150, 64
      %v158 = vpop.permute.xlu0 %157
      %v160 = vmul.f32 %v149, %v158
      %162 = vrot.lane.b32.xlu0 %v160, 32
      %v163 = vpop.permute.xlu0 %162
      %v165 = vadd.f32 %v155, %v163
      %v166 = vtanh.pop %v165
      %168 = vrot.lane.b32.xlu0 %v166, 64
      %v169 = vpop.permute.xlu0 %168
      %v171 = vmul.f32 %v149, %v169
      %v172 = vld [vmem:[%s6] sm:$0xff]
      %v173 = vld [vmem:[%s6 + $0x8] sm:$0xff]
      %v174 = vld [vmem:[%s6 + $0x10] sm:$0xff]
      %v175 = vld [vmem:[%s6 + $0x18] sm:$0xff]
      %v176 = vld [vmem:[%s7] sm:$0x1]
      %178 = vrot.lane.b32.xlu0 %v171, 32
      %v179 = vpop.permute.xlu0 %178
      %v180 = vsel %vm59, %v179, 0
      %182 = vmatprep.subr.mxu0 0.0
      %183 = vmatpush1.msra.mxu0 0.0
      %184 = vmatprep.subr.mxu0 0.0
      %185 = vmatpush1.msra.mxu0 0.0
      %186 = vmatprep.subr.mxu0 0.0
      %187 = vmatpush1.msra.mxu0 0.0
      %188 = vmatprep.subr.mxu0 0.0
      %189 = vmatpush1.msra.mxu0 0.0
      %190 = vmatprep.subr.mxu0 0.0
      %191 = vmatpush1.msra.mxu0 0.0
      %192 = vmatprep.subr.mxu0 0.0
      %193 = vmatpush1.msra.mxu0 0.0
      %194 = vmatprep.subr.mxu0 0.0
      %195 = vmatpush1.msra.mxu0 0.0
      %196 = vmatprep.subr.mxu0 0.0
      %197 = vmatpush1.msra.mxu0 0.0
      %198 = vmatprep.subr.mxu0 0.0
      %199 = vmatpush1.msra.mxu0 0.0
      %200 = vmatprep.subr.mxu0 0.0
      %201 = vmatpush1.msra.mxu0 0.0
      %202 = vmatprep.subr.mxu0 0.0
      %203 = vmatpush1.msra.mxu0 0.0
      %204 = vmatprep.subr.mxu0 0.0
      %205 = vmatpush1.msra.mxu0 0.0
      %206 = vmatprep.subr.mxu0 0.0
      %207 = vmatpush1.msra.mxu0 %v175
      %208 = vmatprep.subr.mxu0 0.0
      %209 = vmatpush1.msra.mxu0 %v174
      %210 = vmatprep.subr.mxu0 0.0
      %211 = vmatpush1.msra.mxu0 %v173
      %212 = vmatprep.subr.mxu0 0.0
      %213 = vmatpush1.msra.mxu0 %v172
      %214 = vmatprep.subr.mxu0 0.0
      %215 = vmatpush2.msra.mxu0 0.0
      %216 = vmatprep.subr.mxu0 0.0
      %217 = vmatpush2.msra.mxu0 0.0
      %218 = vmatprep.subr.mxu0 0.0
      %219 = vmatpush2.msra.mxu0 0.0
      %220 = vmatprep.subr.mxu0 0.0
      %221 = vmatpush2.msra.mxu0 0.0
      %222 = vmatprep.subr.mxu0 0.0
      %223 = vmatpush2.msra.mxu0 0.0
      %224 = vmatprep.subr.mxu0 0.0
      %225 = vmatpush2.msra.mxu0 0.0
      %226 = vmatprep.subr.mxu0 0.0
      %227 = vmatpush2.msra.mxu0 0.0
      %228 = vmatprep.subr.mxu0 0.0
      %229 = vmatpush2.msra.mxu0 0.0
      %230 = vmatprep.subr.mxu0 0.0
      %231 = vmatpush2.msra.mxu0 0.0
      %232 = vmatprep.subr.mxu0 0.0
      %233 = vmatpush2.msra.mxu0 0.0
      %234 = vmatprep.subr.mxu0 0.0
      %235 = vmatpush2.msra.mxu0 0.0
      %236 = vmatprep.subr.mxu0 0.0
      %237 = vmatpush2.msra.mxu0 0.0
      %238 = vmatprep.subr.mxu0 0.0
      %239 = vmatpush2.msra.mxu0 0.0
      %240 = vmatprep.subr.mxu0 0.0
      %241 = vmatpush2.msra.mxu0 0.0
      %242 = vmatprep.subr.mxu0 0.0
      %243 = vmatpush2.msra.mxu0 0.0
      %244 = vmatprep.subr.mxu0 0.0
      %245 = vmatpush2.msra.mxu0 0.0
      %246 = vmatprep.mubr.f32.mxu0 0.0
      %247 = vmatmul.mubr.f32.gmra.mxu0 %v180
      %v248 = vpop.f32.mrf.mxu0
      %v249 = vadd.f32 %v176, %v248
      %v250 = vpop.f32.mrf.mxu0
      %251 = vdwg.mxu0
      %252 = vrot.lane.b32.xlu0 %v171, 96
      %v253 = vpop.permute.xlu0 %252
      %256 = vrot.lane.b32.xlu0 %v165, 64
      %v257 = vpop.permute.xlu0 %256
      %v259 = vsel %vm70, %v249, %v253
      %vm260 = vcmask 785408
      %v261 = vsel %vm260, %v259, %v257
      %s262 = scalar_lea.vmem %s8, %s45
      %263 = vst [vmem:[%s262] sm:$0x1] %v261
      %265 = vrot.lane.b32.xlu0 %v165, 96
      %v266 = vpop.permute.xlu0 %265
    $region42: #{rnnet_sequence_forward.1} parent=1 // loop_footer
      %s49 = sadd.s32 1, %s45
    $region43: #{rnnet_sequence_forward.1} parent=1 // loop_footer_branch
      %44 = sbr.rel target = $region39
    $region44: #{rnnet_sequence_forward.1} parent=1 // loop_exit
      _
    // Predicated region
    $region45: #{rnnet_sequence_forward.1} parent=1 // pred_check
      _
    $region46: #{rnnet_sequence_forward.1} parent=1 // pred_check_branch
      %269 = sbr.rel (0) target = $region48
    $region47: #{rnnet_sequence_forward.1} parent=1 // pred_region
      _
    $region48: #{rnnet_sequence_forward.1} parent=1 // pred_fallthru
      _
    // Predicated region
    $region49: #{rnnet_sequence_forward.1} parent=1 // pred_check
      _
    $region50: #{rnnet_sequence_forward.1} parent=1 // pred_check_branch
      %271 = sbr.rel (0) target = $region52
    $region51: #{rnnet_sequence_forward.1} parent=1 // pred_region
      _
    $region52: #{rnnet_sequence_forward.1} parent=1 // pred_fallthru
      _
    %272 = vsyncpa [#allocation3], 1

</llo_original>
